<compile_context>
chip_gen: v7x
topology: tpu7x:2x2x1
jax: 0.10.0
libtpu: 0.0.40
codegen_flags: <defaults>
</compile_context>

<pallas_src>
import functools

import jax
import jax.numpy as jnp
from jax.experimental import pallas as pl
from jax.experimental.pallas import tpu as pltpu

LN_EPS = 1e-5
LANE = 128
SUBLANE_BF16 = 16  # bf16 packs 16 sublanes / vreg


def _round_up(x, m):
    return (x + m - 1) // m * m


def _pad_to(a, shape):
    pads = [(0, t - s) for s, t in zip(a.shape, shape)]
    return jnp.pad(a, pads)


def _gelu_exact(x):
    # PyTorch nn.GELU() default: exact erf formulation.
    return 0.5 * x * (1.0 + jax.lax.erf(x * 0.7071067811865476))


def _layernorm_fused(x, gamma, beta, n_real):
    # Single reduction pass: mean = sum/n, var = E[x^2] - mean^2.
    # Padded feature columns are exactly zero before LN, so sums over the
    # padded width equal sums over the real width; divide by the real count.
    # gamma/beta are zero-padded, so padded columns stay exactly zero after LN.
    inv_n = 1.0 / n_real
    s1 = jnp.sum(x, axis=-1, keepdims=True)
    s2 = jnp.sum(x * x, axis=-1, keepdims=True)
    mean = s1 * inv_n
    var = s2 * inv_n - mean * mean
    inv = jax.lax.rsqrt(var + LN_EPS)
    return (x - mean) * inv * gamma + beta


def _decoder_kernel(x_ref,
                    w1_ref, b1_ref, g1_ref, be1_ref,
                    w2_ref, b2_ref, g2_ref, be2_ref,
                    w3_ref, b3_ref,
                    o_ref, *, h_real, h2_real):
    # bf16 matmul inputs, f32 accumulation (MXU native); elementwise in f32.
    x = x_ref[...].astype(jnp.bfloat16)

    # ---- Block 1: Linear(H,H) + LayerNorm(H) + GELU (+ Dropout = identity) ----
    h = jnp.dot(x, w1_ref[...], preferred_element_type=jnp.float32) + b1_ref[...]
    h = _layernorm_fused(h, g1_ref[...], be1_ref[...], h_real)
    h = _gelu_exact(h)
    # TODO(synk): Dropout(0.1) in training mode would need pltpu.prng_* masking;
    # inference-mode identity is used here.

    # ---- Block 2: Linear(H,H//2) + LayerNorm(H//2) + GELU (+ Dropout) ----
    h = jnp.dot(h.astype(jnp.bfloat16), w2_ref[...],
                preferred_element_type=jnp.float32) + b2_ref[...]
    h = _layernorm_fused(h, g2_ref[...], be2_ref[...], h2_real)
    h = _gelu_exact(h)

    # ---- Block 3: Linear(H//2, output_dim) ----
    y = jnp.dot(h.astype(jnp.bfloat16), w3_ref[...],
                preferred_element_type=jnp.float32) + b3_ref[...]

    o_ref[...] = y.astype(o_ref.dtype)


def modality_decoder_forward(x, params, *, block_b=None):
    """x: (B, H) embeddings. params: dict of weights. Returns (B, output_dim)."""
    B, H = x.shape
    H2 = params["w2"].shape[1]
    out_dim = params["w3"].shape[1]

    # Lane-dense padded feature widths (multiples of 128).
    Hp = _round_up(H, LANE)
    H2p = _round_up(H2, LANE)
    Op = _round_up(out_dim, LANE)

    # Batch tile: multiple of 16 (bf16 sublane packing), >= 2 grid steps so the
    # pipeline overlaps DMA with compute and megacore can shard the axis.
    if block_b is None:
        block_b = min(512, max(SUBLANE_BF16, _round_up(pl.cdiv(B, 2), SUBLANE_BF16)))
    block_b = max(SUBLANE_BF16, _round_up(block_b, SUBLANE_BF16))
    Bp = max(_round_up(B, block_b), 2 * block_b)
    grid = (Bp // block_b,)

    # Zero-pad everything. Zero rows/cols in W + zero bias/gamma/beta keep the
    # padded features exactly zero through every layer.
    bf16 = jnp.bfloat16
    f32 = jnp.float32
    xp = _pad_to(x, (Bp, Hp))
    w1 = _pad_to(params["w1"], (Hp, Hp)).astype(bf16)
    w2 = _pad_to(params["w2"], (Hp, H2p)).astype(bf16)
    w3 = _pad_to(params["w3"], (H2p, Op)).astype(bf16)
    b1 = _pad_to(params["b1"], (1, Hp)).astype(f32)
    b2 = _pad_to(params["b2"], (1, H2p)).astype(f32)
    b3 = _pad_to(params["b3"], (1, Op)).astype(f32)
    g1 = _pad_to(params["g1"], (1, Hp)).astype(f32)
    be1 = _pad_to(params["be1"], (1, Hp)).astype(f32)
    g2 = _pad_to(params["g2"], (1, H2p)).astype(f32)
    be2 = _pad_to(params["be2"], (1, H2p)).astype(f32)

    # Explicit scoped-VMEM budget from the real footprint (double-buffered I/O
    # tiles + weights + f32 activation working set), clamped below v7x's 64 MiB.
    itemsize = jnp.dtype(x.dtype).itemsize
    w_bytes = 2 * (Hp * Hp + Hp * H2p + H2p * Op)            # bf16 weights
    vec_bytes = 4 * (3 * Hp + 3 * H2p + Op)                  # biases + LN params (f32)
    io_bytes = block_b * (Hp + Op) * itemsize                # per-buffer x/out tiles
    act_bytes = 4 * block_b * (Hp + H2p + Op) * 4            # f32 activations + headroom
    vmem_limit = 2 * (w_bytes + vec_bytes + io_bytes) + act_bytes + (4 << 20)
    vmem_limit = int(min(max(vmem_limit, 16 << 20), 48 << 20))

    in_specs = [
        pl.BlockSpec((block_b, Hp), lambda i: (i, 0)),   # x tile
        pl.BlockSpec((Hp, Hp), lambda i: (0, 0)),        # w1 (resident)
        pl.BlockSpec((1, Hp), lambda i: (0, 0)),         # b1
        pl.BlockSpec((1, Hp), lambda i: (0, 0)),         # ln1 gamma
        pl.BlockSpec((1, Hp), lambda i: (0, 0)),         # ln1 beta
        pl.BlockSpec((Hp, H2p), lambda i: (0, 0)),       # w2
        pl.BlockSpec((1, H2p), lambda i: (0, 0)),        # b2
        pl.BlockSpec((1, H2p), lambda i: (0, 0)),        # ln2 gamma
        pl.BlockSpec((1, H2p), lambda i: (0, 0)),        # ln2 beta
        pl.BlockSpec((H2p, Op), lambda i: (0, 0)),       # w3
        pl.BlockSpec((1, Op), lambda i: (0, 0)),         # b3
    ]
    out_spec = pl.BlockSpec((block_b, Op), lambda i: (i, 0))

    kernel = functools.partial(_decoder_kernel,
                               h_real=float(H), h2_real=float(H2))

    out_padded = pl.pallas_call(
        kernel,
        out_shape=jax.ShapeDtypeStruct((Bp, Op), x.dtype),
        grid_spec=pltpu.PrefetchScalarGridSpec(
            num_scalar_prefetch=0,
            grid=grid,
            in_specs=in_specs,
            out_specs=out_spec,
        ),
        compiler_params=pltpu.CompilerParams(
            dimension_semantics=("parallel",),
            vmem_limit_bytes=vmem_limit,
        ),
    )(xp, w1, b1, g1, be1, w2, b2, g2, be2, w3, b3)

    return out_padded[:B, :out_dim]


def init_params(key, hidden_dim, output_dim, dtype=jnp.float32):
    """Deterministic synthetic init (shapes match the PyTorch module)."""
    H, H2 = hidden_dim, hidden_dim // 2
    ks = jax.random.split(key, 6)

    def lin(kw, kb, fan_in, fan_out):
        bound = 1.0 / jnp.sqrt(fan_in)
        w = jax.random.uniform(kw, (fan_in, fan_out), dtype, -bound, bound)
        b = jax.random.uniform(kb, (1, fan_out), dtype, -bound, bound)
        return w, b

    w1, b1 = lin(ks[0], ks[1], H, H)
    w2, b2 = lin(ks[2], ks[3], H, H2)
    w3, b3 = lin(ks[4], ks[5], H2, output_dim)
    return {
        "w1": w1, "b1": b1,
        "g1": jnp.ones((1, H), dtype), "be1": jnp.zeros((1, H), dtype),
        "w2": w2, "b2": b2,
        "g2": jnp.ones((1, H2), dtype), "be2": jnp.zeros((1, H2), dtype),
        "w3": w3, "b3": b3,
    }


def _reference(x, p):
    """Plain-JAX forward mirroring the kernel numerics (bf16 matmul, f32 acc)."""
    def mm(a, w):
        return jnp.dot(a.astype(jnp.bfloat16), w.astype(jnp.bfloat16),
                       preferred_element_type=jnp.float32)

    def ln(h, g, b):
        mean = jnp.mean(h, axis=-1, keepdims=True)
        var = jnp.mean(jnp.square(h - mean), axis=-1, keepdims=True)
        return (h - mean) * jax.lax.rsqrt(var + LN_EPS) * g + b

    h = mm(x, p["w1"]) + p["b1"]
    h = _gelu_exact(ln(h, p["g1"], p["be1"]))
    h = mm(h, p["w2"]) + p["b2"]
    h = _gelu_exact(ln(h, p["g2"], p["be2"]))
    return mm(h, p["w3"]) + p["b3"]


if __name__ == "__main__":
    key = jax.random.PRNGKey(0)
    k_x, k_p = jax.random.split(key)

    B = 8
    HIDDEN_DIM = 32        # config.hidden_dim
    OUTPUT_DIM = 16        # output_dim for this modality

    x = jax.random.normal(k_x, (B, HIDDEN_DIM), jnp.float32)
    params = init_params(k_p, HIDDEN_DIM, OUTPUT_DIM)

    out = modality_decoder_forward(x, params)
    out = jax.block_until_ready(out)

    ref = _reference(x, params)
    assert out.shape == (B, OUTPUT_DIM), out.shape
    # bf16 matmul inputs (f32 accumulation) => loosened tolerance vs f32 ref.
    assert jnp.allclose(out, ref, atol=2e-2, rtol=2e-2), (
        float(jnp.max(jnp.abs(out - ref))))

    print("KERNEL_OK")
</pallas_src>

<mosaic_0001>
module attributes {stable_mosaic.version = 11 : i64} {
  func.func @_decoder_kernel(%arg0: i32, %arg1: memref<16x128xf32, #tpu.memory_space<vmem>>, %arg2: memref<128x128xbf16, #tpu.memory_space<vmem>>, %arg3: memref<1x128xf32, #tpu.memory_space<vmem>>, %arg4: memref<1x128xf32, #tpu.memory_space<vmem>>, %arg5: memref<1x128xf32, #tpu.memory_space<vmem>>, %arg6: memref<128x128xbf16, #tpu.memory_space<vmem>>, %arg7: memref<1x128xf32, #tpu.memory_space<vmem>>, %arg8: memref<1x128xf32, #tpu.memory_space<vmem>>, %arg9: memref<1x128xf32, #tpu.memory_space<vmem>>, %arg10: memref<128x128xbf16, #tpu.memory_space<vmem>>, %arg11: memref<1x128xf32, #tpu.memory_space<vmem>>, %arg12: memref<16x128xf32, #tpu.memory_space<vmem>>) attributes {dimension_semantics = [#tpu.dimension_semantics<parallel>], iteration_bounds = array<i64: 2>, scalar_prefetch = 0 : i64, scratch_operands = 0 : i64, tpu.core_type = #tpu.core_type<tc>, window_params = [{transform_indices = @transform_0, window_bounds = array<i64: 16, 128>}, {pipeline_mode = #tpu.pipeline_mode<synchronous>, transform_indices = @transform_1, window_bounds = array<i64: 128, 128>}, {pipeline_mode = #tpu.pipeline_mode<synchronous>, transform_indices = @transform_2, window_bounds = array<i64: 1, 128>}, {pipeline_mode = #tpu.pipeline_mode<synchronous>, transform_indices = @transform_3, window_bounds = array<i64: 1, 128>}, {pipeline_mode = #tpu.pipeline_mode<synchronous>, transform_indices = @transform_4, window_bounds = array<i64: 1, 128>}, {pipeline_mode = #tpu.pipeline_mode<synchronous>, transform_indices = @transform_5, window_bounds = array<i64: 128, 128>}, {pipeline_mode = #tpu.pipeline_mode<synchronous>, transform_indices = @transform_6, window_bounds = array<i64: 1, 128>}, {pipeline_mode = #tpu.pipeline_mode<synchronous>, transform_indices = @transform_7, window_bounds = array<i64: 1, 128>}, {pipeline_mode = #tpu.pipeline_mode<synchronous>, transform_indices = @transform_8, window_bounds = array<i64: 1, 128>}, {pipeline_mode = #tpu.pipeline_mode<synchronous>, transform_indices = @transform_9, window_bounds = array<i64: 128, 128>}, {pipeline_mode = #tpu.pipeline_mode<synchronous>, transform_indices = @transform_10, window_bounds = array<i64: 1, 128>}, {transform_indices = @transform_11, window_bounds = array<i64: 16, 128>}]} {
    %c0 = arith.constant 0 : index
    %c0_0 = arith.constant 0 : index
    %0 = vector.load %arg1[%c0, %c0_0] : memref<16x128xf32, #tpu.memory_space<vmem>>, vector<16x128xf32>
    %1 = arith.truncf %0 : vector<16x128xf32> to vector<16x128xbf16>
    %c0_1 = arith.constant 0 : index
    %c0_2 = arith.constant 0 : index
    %2 = vector.load %arg2[%c0_1, %c0_2] : memref<128x128xbf16, #tpu.memory_space<vmem>>, vector<128x128xbf16>
    %cst = arith.constant dense<0.000000e+00> : vector<16x128xf32>
    %3 = tpu.matmul %1, %2, %cst {dimension_numbers = #tpu.dot_dimension_numbers<[1], [0], [0], [1], [0, 0, 1, 1], [], []>} : vector<16x128xbf16>, vector<128x128xbf16>, vector<16x128xf32> -> vector<16x128xf32>
    %c0_3 = arith.constant 0 : index
    %c0_4 = arith.constant 0 : index
    %4 = vector.load %arg3[%c0_3, %c0_4] : memref<1x128xf32, #tpu.memory_space<vmem>>, vector<1x128xf32>
    %5 = vector.broadcast %4 : vector<1x128xf32> to vector<16x128xf32>
    %6 = arith.addf %3, %5 : vector<16x128xf32>
    %c0_5 = arith.constant 0 : index
    %c0_6 = arith.constant 0 : index
    %7 = vector.load %arg4[%c0_5, %c0_6] : memref<1x128xf32, #tpu.memory_space<vmem>>, vector<1x128xf32>
    %c0_7 = arith.constant 0 : index
    %c0_8 = arith.constant 0 : index
    %8 = vector.load %arg5[%c0_7, %c0_8] : memref<1x128xf32, #tpu.memory_space<vmem>>, vector<1x128xf32>
    %cst_9 = arith.constant dense<0.000000e+00> : vector<16xf32>
    %9 = vector.multi_reduction <add>, %6, %cst_9 [1] : vector<16x128xf32> to vector<16xf32>
    %10 = vector.shape_cast %9 : vector<16xf32> to vector<16x1xf32>
    %11 = arith.mulf %6, %6 : vector<16x128xf32>
    %cst_10 = arith.constant dense<0.000000e+00> : vector<16xf32>
    %12 = vector.multi_reduction <add>, %11, %cst_10 [1] : vector<16x128xf32> to vector<16xf32>
    %13 = vector.shape_cast %12 : vector<16xf32> to vector<16x1xf32>
    %cst_11 = arith.constant 3.125000e-02 : f32
    %14 = vector.broadcast %cst_11 : f32 to vector<16x1xf32>
    %15 = arith.mulf %10, %14 : vector<16x1xf32>
    %cst_12 = arith.constant 3.125000e-02 : f32
    %16 = vector.broadcast %cst_12 : f32 to vector<16x1xf32>
    %17 = arith.mulf %13, %16 : vector<16x1xf32>
    %18 = arith.mulf %15, %15 : vector<16x1xf32>
    %19 = arith.subf %17, %18 : vector<16x1xf32>
    %cst_13 = arith.constant 9.99999974E-6 : f32
    %20 = vector.broadcast %cst_13 : f32 to vector<16x1xf32>
    %21 = arith.addf %19, %20 : vector<16x1xf32>
    %22 = math.rsqrt %21 : vector<16x1xf32>
    %23 = vector.broadcast %15 : vector<16x1xf32> to vector<16x128xf32>
    %24 = arith.subf %6, %23 : vector<16x128xf32>
    %25 = vector.broadcast %22 : vector<16x1xf32> to vector<16x128xf32>
    %26 = arith.mulf %24, %25 : vector<16x128xf32>
    %27 = vector.broadcast %7 : vector<1x128xf32> to vector<16x128xf32>
    %28 = arith.mulf %26, %27 : vector<16x128xf32>
    %29 = vector.broadcast %8 : vector<1x128xf32> to vector<16x128xf32>
    %30 = arith.addf %28, %29 : vector<16x128xf32>
    %cst_14 = arith.constant 5.000000e-01 : f32
    %31 = vector.broadcast %cst_14 : f32 to vector<16x128xf32>
    %32 = arith.mulf %31, %30 : vector<16x128xf32>
    %cst_15 = arith.constant 0.707106769 : f32
    %33 = vector.broadcast %cst_15 : f32 to vector<16x128xf32>
    %34 = arith.mulf %30, %33 : vector<16x128xf32>
    %35 = math.erf %34 : vector<16x128xf32>
    %cst_16 = arith.constant 1.000000e+00 : f32
    %36 = vector.broadcast %cst_16 : f32 to vector<16x128xf32>
    %37 = arith.addf %36, %35 : vector<16x128xf32>
    %38 = arith.mulf %32, %37 : vector<16x128xf32>
    %39 = arith.truncf %38 : vector<16x128xf32> to vector<16x128xbf16>
    %c0_17 = arith.constant 0 : index
    %c0_18 = arith.constant 0 : index
    %40 = vector.load %arg6[%c0_17, %c0_18] : memref<128x128xbf16, #tpu.memory_space<vmem>>, vector<128x128xbf16>
    %cst_19 = arith.constant dense<0.000000e+00> : vector<16x128xf32>
    %41 = tpu.matmul %39, %40, %cst_19 {dimension_numbers = #tpu.dot_dimension_numbers<[1], [0], [0], [1], [0, 0, 1, 1], [], []>} : vector<16x128xbf16>, vector<128x128xbf16>, vector<16x128xf32> -> vector<16x128xf32>
    %c0_20 = arith.constant 0 : index
    %c0_21 = arith.constant 0 : index
    %42 = vector.load %arg7[%c0_20, %c0_21] : memref<1x128xf32, #tpu.memory_space<vmem>>, vector<1x128xf32>
    %43 = vector.broadcast %42 : vector<1x128xf32> to vector<16x128xf32>
    %44 = arith.addf %41, %43 : vector<16x128xf32>
    %c0_22 = arith.constant 0 : index
    %c0_23 = arith.constant 0 : index
    %45 = vector.load %arg8[%c0_22, %c0_23] : memref<1x128xf32, #tpu.memory_space<vmem>>, vector<1x128xf32>
    %c0_24 = arith.constant 0 : index
    %c0_25 = arith.constant 0 : index
    %46 = vector.load %arg9[%c0_24, %c0_25] : memref<1x128xf32, #tpu.memory_space<vmem>>, vector<1x128xf32>
    %cst_26 = arith.constant dense<0.000000e+00> : vector<16xf32>
    %47 = vector.multi_reduction <add>, %44, %cst_26 [1] : vector<16x128xf32> to vector<16xf32>
    %48 = vector.shape_cast %47 : vector<16xf32> to vector<16x1xf32>
    %49 = arith.mulf %44, %44 : vector<16x128xf32>
    %cst_27 = arith.constant dense<0.000000e+00> : vector<16xf32>
    %50 = vector.multi_reduction <add>, %49, %cst_27 [1] : vector<16x128xf32> to vector<16xf32>
    %51 = vector.shape_cast %50 : vector<16xf32> to vector<16x1xf32>
    %cst_28 = arith.constant 6.250000e-02 : f32
    %52 = vector.broadcast %cst_28 : f32 to vector<16x1xf32>
    %53 = arith.mulf %48, %52 : vector<16x1xf32>
    %cst_29 = arith.constant 6.250000e-02 : f32
    %54 = vector.broadcast %cst_29 : f32 to vector<16x1xf32>
    %55 = arith.mulf %51, %54 : vector<16x1xf32>
    %56 = arith.mulf %53, %53 : vector<16x1xf32>
    %57 = arith.subf %55, %56 : vector<16x1xf32>
    %cst_30 = arith.constant 9.99999974E-6 : f32
    %58 = vector.broadcast %cst_30 : f32 to vector<16x1xf32>
    %59 = arith.addf %57, %58 : vector<16x1xf32>
    %60 = math.rsqrt %59 : vector<16x1xf32>
    %61 = vector.broadcast %53 : vector<16x1xf32> to vector<16x128xf32>
    %62 = arith.subf %44, %61 : vector<16x128xf32>
    %63 = vector.broadcast %60 : vector<16x1xf32> to vector<16x128xf32>
    %64 = arith.mulf %62, %63 : vector<16x128xf32>
    %65 = vector.broadcast %45 : vector<1x128xf32> to vector<16x128xf32>
    %66 = arith.mulf %64, %65 : vector<16x128xf32>
    %67 = vector.broadcast %46 : vector<1x128xf32> to vector<16x128xf32>
    %68 = arith.addf %66, %67 : vector<16x128xf32>
    %cst_31 = arith.constant 5.000000e-01 : f32
    %69 = vector.broadcast %cst_31 : f32 to vector<16x128xf32>
    %70 = arith.mulf %69, %68 : vector<16x128xf32>
    %cst_32 = arith.constant 0.707106769 : f32
    %71 = vector.broadcast %cst_32 : f32 to vector<16x128xf32>
    %72 = arith.mulf %68, %71 : vector<16x128xf32>
    %73 = math.erf %72 : vector<16x128xf32>
    %cst_33 = arith.constant 1.000000e+00 : f32
    %74 = vector.broadcast %cst_33 : f32 to vector<16x128xf32>
    %75 = arith.addf %74, %73 : vector<16x128xf32>
    %76 = arith.mulf %70, %75 : vector<16x128xf32>
    %77 = arith.truncf %76 : vector<16x128xf32> to vector<16x128xbf16>
    %c0_34 = arith.constant 0 : index
    %c0_35 = arith.constant 0 : index
    %78 = vector.load %arg10[%c0_34, %c0_35] : memref<128x128xbf16, #tpu.memory_space<vmem>>, vector<128x128xbf16>
    %cst_36 = arith.constant dense<0.000000e+00> : vector<16x128xf32>
    %79 = tpu.matmul %77, %78, %cst_36 {dimension_numbers = #tpu.dot_dimension_numbers<[1], [0], [0], [1], [0, 0, 1, 1], [], []>} : vector<16x128xbf16>, vector<128x128xbf16>, vector<16x128xf32> -> vector<16x128xf32>
    %c0_37 = arith.constant 0 : index
    %c0_38 = arith.constant 0 : index
    %80 = vector.load %arg11[%c0_37, %c0_38] : memref<1x128xf32, #tpu.memory_space<vmem>>, vector<1x128xf32>
    %81 = vector.broadcast %80 : vector<1x128xf32> to vector<16x128xf32>
    %82 = arith.addf %79, %81 : vector<16x128xf32>
    %c0_39 = arith.constant 0 : index
    %c0_40 = arith.constant 0 : index
    %83 = vector.load %arg12[%c0_39, %c0_40] : memref<16x128xf32, #tpu.memory_space<vmem>>, vector<16x128xf32>
    tpu.vector_store %arg12[%c0_39, %c0_40], %82 {strides = array<i32>} : memref<16x128xf32, #tpu.memory_space<vmem>>, vector<16x128xf32>,
    return
  }
  func.func @transform_0(%arg0: i32) -> (i32, i32) {
    %c0_i32 = arith.constant 0 : i32
    %c0_i32_0 = arith.constant 0 : i32
    return %arg0, %c0_i32 : i32, i32
  }
  func.func @transform_1(%arg0: i32) -> (i32, i32) {
    %c0_i32 = arith.constant 0 : i32
    %c0_i32_0 = arith.constant 0 : i32
    %c0_i32_1 = arith.constant 0 : i32
    return %c0_i32, %c0_i32_0 : i32, i32
  }
  func.func @transform_2(%arg0: i32) -> (i32, i32) {
    %c0_i32 = arith.constant 0 : i32
    %c0_i32_0 = arith.constant 0 : i32
    %c0_i32_1 = arith.constant 0 : i32
    return %c0_i32, %c0_i32_0 : i32, i32
  }
  func.func @transform_3(%arg0: i32) -> (i32, i32) {
    %c0_i32 = arith.constant 0 : i32
    %c0_i32_0 = arith.constant 0 : i32
    %c0_i32_1 = arith.constant 0 : i32
    return %c0_i32, %c0_i32_0 : i32, i32
  }
  func.func @transform_4(%arg0: i32) -> (i32, i32) {
    %c0_i32 = arith.constant 0 : i32
    %c0_i32_0 = arith.constant 0 : i32
    %c0_i32_1 = arith.constant 0 : i32
    return %c0_i32, %c0_i32_0 : i32, i32
  }
  func.func @transform_5(%arg0: i32) -> (i32, i32) {
    %c0_i32 = arith.constant 0 : i32
    %c0_i32_0 = arith.constant 0 : i32
    %c0_i32_1 = arith.constant 0 : i32
    return %c0_i32, %c0_i32_0 : i32, i32
  }
  func.func @transform_6(%arg0: i32) -> (i32, i32) {
    %c0_i32 = arith.constant 0 : i32
    %c0_i32_0 = arith.constant 0 : i32
    %c0_i32_1 = arith.constant 0 : i32
    return %c0_i32, %c0_i32_0 : i32, i32
  }
  func.func @transform_7(%arg0: i32) -> (i32, i32) {
    %c0_i32 = arith.constant 0 : i32
    %c0_i32_0 = arith.constant 0 : i32
    %c0_i32_1 = arith.constant 0 : i32
    return %c0_i32, %c0_i32_0 : i32, i32
  }
  func.func @transform_8(%arg0: i32) -> (i32, i32) {
    %c0_i32 = arith.constant 0 : i32
    %c0_i32_0 = arith.constant 0 : i32
    %c0_i32_1 = arith.constant 0 : i32
    return %c0_i32, %c0_i32_0 : i32, i32
  }
  func.func @transform_9(%arg0: i32) -> (i32, i32) {
    %c0_i32 = arith.constant 0 : i32
    %c0_i32_0 = arith.constant 0 : i32
    %c0_i32_1 = arith.constant 0 : i32
    return %c0_i32, %c0_i32_0 : i32, i32
  }
  func.func @transform_10(%arg0: i32) -> (i32, i32) {
    %c0_i32 = arith.constant 0 : i32
    %c0_i32_0 = arith.constant 0 : i32
    %c0_i32_1 = arith.constant 0 : i32
    return %c0_i32, %c0_i32_0 : i32, i32
  }
  func.func @transform_11(%arg0: i32) -> (i32, i32) {
    %c0_i32 = arith.constant 0 : i32
    %c0_i32_0 = arith.constant 0 : i32
    return %arg0, %c0_i32 : i32, i32
  }
}

</mosaic_0001>

<llo_original>
// kernel: tpu_custom_call.1
$region0: #{tpu_custom_call.1}
  #allocation0 [shape = 'u32[]', space=smem, size = 0x4, offset = 0x4, fixed_abs, tag = 'smem constant byte address 0x4 - core index']
  #allocation1 [shape = 'u32[144,128]{1,0:T(1,128)}', space=vmem, size = 0x12000, scoped, tag = 'internal scratch']
  %s0 = inlined_call_operand.hbm [shape: f32[32,128], index: 0, kind: input, shape index: {}]
  %s1 = inlined_call_operand.hbm [shape: bf16[128,128], index: 1, kind: input, shape index: {}]
  %s2 = inlined_call_operand.vmem [shape: f32[1,128], index: 2, kind: input, shape index: {}]
  %s3 = inlined_call_operand.vmem [shape: f32[1,128], index: 3, kind: input, shape index: {}]
  %s4 = inlined_call_operand.vmem [shape: f32[1,128], index: 4, kind: input, shape index: {}]
  %s5 = inlined_call_operand.hbm [shape: bf16[128,128], index: 5, kind: input, shape index: {}]
  %s6 = inlined_call_operand.vmem [shape: f32[1,128], index: 6, kind: input, shape index: {}]
  %s7 = inlined_call_operand.vmem [shape: f32[1,128], index: 7, kind: input, shape index: {}]
  %s8 = inlined_call_operand.vmem [shape: f32[1,128], index: 8, kind: input, shape index: {}]
  %s9 = inlined_call_operand.hbm [shape: bf16[128,128], index: 9, kind: input, shape index: {}]
  %s10 = inlined_call_operand.vmem [shape: f32[1,128], index: 10, kind: input, shape index: {}]
  %s11 = inlined_call_operand.hbm [shape: f32[32,128], index: 11, kind: output, shape index: {}]
  %s12 = sld [smem:[#allocation0]]
  $region93: #{tpu_custom_call.1} parent=0
    _
  %s14 = ssub.s32 1, %s12
  %s15 = scalar_select 0, %s14, %s12
  $region1: #{tpu_custom_call.1} parent=0
    #allocation2 [shape = 'u8[16384]{0}', space=vmem, size = 0x4000, scoped, tag = 'input window, operand 0']
    #allocation3 [shape = 's32[2]{0}', space=sflag, size = 0x8, scoped, tag = 'scoped memory for tpu_custom_call.1']
    #allocation4 [shape = 's32[2]{0}', space=sflag, size = 0x8, scoped, tag = 'scoped memory for tpu_custom_call.1']
    #allocation5 [shape = 'u8[32768]{0}', space=vmem, size = 0x8000, scoped, tag = 'input window, operand 1, single buffered']
    #allocation6 [shape = 's32[1]{0}', space=sflag, size = 0x4, scoped, tag = 'scoped memory for tpu_custom_call.1']
    #allocation7 [shape = 'u8[32768]{0}', space=vmem, size = 0x8000, scoped, tag = 'input window, operand 5, single buffered']
    #allocation8 [shape = 'u8[32768]{0}', space=vmem, size = 0x8000, scoped, tag = 'input window, operand 9, single buffered']
    #allocation9 [shape = 's32[1]{0}', space=sflag, size = 0x4, scoped, tag = 'scoped memory for tpu_custom_call.1']
    #allocation10 [shape = 'u8[16384]{0}', space=vmem, size = 0x4000, scoped, tag = 'output window, operand 0']
    %16 = vsyncpa [#allocation3], 0
    %s17 = scalar_lea.sflag [#allocation3], 1
    %18 = vsyncpa %s17, 0
    %19 = vsyncpa [#allocation6], 0
    %20 = vsyncpa [#allocation9], 0
    %21 = vsyncpa [#allocation4], 0
    %s22 = scalar_lea.sflag [#allocation4], 1
    %23 = vsyncpa %s22, 0
    loop: start=0, step=1, limit=4
    $region2: #{tpu_custom_call.1} parent=1 // loop_pre_header
      _
    $region3: #{tpu_custom_call.1} parent=1 // loop_header
      %s25 = sphi 0, %s29
      %p26 = scmp.ge.s32.totalorder %s25, 4
      %s35 = sphi 0, %s37
      %s38 = sphi 0, %s35
      %s39 = sphi 0, %s38
      %s55 = sphi 0, %s39
      %s59 = sphi 0, %s59
      %s61 = sphi 0, %s59
      %s62 = sphi 0, %s61
      %s76 = sphi 0, %s62
      %s80 = sphi 0, %s80
      %s82 = sphi 0, %s80
      %s83 = sphi 0, %s82
      %s97 = sphi 0, %s83
      %s101 = sphi 0, %s101
      %s103 = sphi 0, %s101
      %s104 = sphi 0, %s103
      %s118 = sphi 0, %s104
      %s122 = sphi 0, %s122
      %s124 = sphi 0, %s122
      %s125 = sphi 0, %s124
      %s139 = sphi 0, %s125
      %s143 = sphi 0, %s143
      %s145 = sphi 0, %s143
      %s146 = sphi 0, %s145
      %s160 = sphi 0, %s146
      %s164 = sphi 0, %s164
      %s166 = sphi 0, %s164
      %s167 = sphi 0, %s166
      %s181 = sphi 0, %s167
      %s185 = sphi 0, %s185
      %s187 = sphi 0, %s185
      %s188 = sphi 0, %s187
      %s202 = sphi 0, %s188
      %s206 = sphi 0, %s206
      %s208 = sphi 0, %s206
      %s209 = sphi 0, %s208
      %s223 = sphi 0, %s209
      %s227 = sphi 0, %s227
      %s229 = sphi 0, %s227
      %s230 = sphi 0, %s229
      %s244 = sphi 0, %s230
      %s248 = sphi 0, %s248
      %s250 = sphi 0, %s248
      %s251 = sphi 0, %s250
      %s265 = sphi 0, %s251
      %s271 = sphi 0, %s273
      %s274 = sphi 0, %s271
      %s275 = sphi 0, %s274
      %s291 = sphi 0, %s275
    $region4: #{tpu_custom_call.1} parent=1 // loop_header_branch
      %28 = sbr.rel (%p26) target = $region8
    $region5: #{tpu_custom_call.1} parent=1 // loop_body
      %s30 = ssub.s32 %s25, 1
      %s31 = ssub.s32 %s25, 2
      %s32 = sadd.s32 %s25, 1
      %s33 = ssub.s32 %s25, %s32
      %p34 = scmp.eq.s32.totalorder %s33, 0
      %s36 = sadd.s32 %s35, 1
      %s37 = scalar_select %p34, %s35, %s36
      %p40 = pneg %p34
      %p41 = scmp.eq.s32.totalorder %s25, 1
      %p42 = por %p40, %p41
      %p43 = scmp.ne.s32.totalorder %s35, %s38
      %p44 = scmp.eq.s32.totalorder %s25, 0
      %p45 = por %p43, %p44
      %p46 = scmp.ne.s32.totalorder %s35, %s38
      %p47 = scmp.eq.s32.totalorder %s30, 1
      %p48 = por %p46, %p47
      %p49 = scmp.ne.s32.totalorder %s38, %s39
      %p50 = scmp.eq.s32.totalorder %s30, 0
      %p51 = por %p49, %p50
      %p52 = scmp.ne.s32.totalorder %s38, %s39
      %p53 = scmp.eq.s32.totalorder %s31, 1
      %p54 = por %p52, %p53
      %p56 = scmp.ne.s32.totalorder %s39, %s55
      %p57 = scmp.eq.s32.totalorder %s31, 0
      %p58 = por %p56, %p57
      %s60 = sadd.s32 %s59, 1
      %p63 = scmp.eq.s32.totalorder %s25, 1
      %p64 = scmp.ne.s32.totalorder %s59, %s61
      %p65 = scmp.eq.s32.totalorder %s25, 0
      %p66 = por %p64, %p65
      %p67 = scmp.ne.s32.totalorder %s59, %s61
      %p68 = scmp.eq.s32.totalorder %s30, 1
      %p69 = por %p67, %p68
      %p70 = scmp.ne.s32.totalorder %s61, %s62
      %p71 = scmp.eq.s32.totalorder %s30, 0
      %p72 = por %p70, %p71
      %p73 = scmp.ne.s32.totalorder %s61, %s62
      %p74 = scmp.eq.s32.totalorder %s31, 1
      %p75 = por %p73, %p74
      %p77 = scmp.ne.s32.totalorder %s62, %s76
      %p78 = scmp.eq.s32.totalorder %s31, 0
      %p79 = por %p77, %p78
      %s81 = sadd.s32 %s80, 1
      %p84 = scmp.eq.s32.totalorder %s25, 1
      %p85 = scmp.ne.s32.totalorder %s80, %s82
      %p86 = scmp.eq.s32.totalorder %s25, 0
      %p87 = por %p85, %p86
      %p88 = scmp.ne.s32.totalorder %s80, %s82
      %p89 = scmp.eq.s32.totalorder %s30, 1
      %p90 = por %p88, %p89
      %p91 = scmp.ne.s32.totalorder %s82, %s83
      %p92 = scmp.eq.s32.totalorder %s30, 0
      %p93 = por %p91, %p92
      %p94 = scmp.ne.s32.totalorder %s82, %s83
      %p95 = scmp.eq.s32.totalorder %s31, 1
      %p96 = por %p94, %p95
      %p98 = scmp.ne.s32.totalorder %s83, %s97
      %p99 = scmp.eq.s32.totalorder %s31, 0
      %p100 = por %p98, %p99
      %s102 = sadd.s32 %s101, 1
      %p105 = scmp.eq.s32.totalorder %s25, 1
      %p106 = scmp.ne.s32.totalorder %s101, %s103
      %p107 = scmp.eq.s32.totalorder %s25, 0
      %p108 = por %p106, %p107
      %p109 = scmp.ne.s32.totalorder %s101, %s103
      %p110 = scmp.eq.s32.totalorder %s30, 1
      %p111 = por %p109, %p110
      %p112 = scmp.ne.s32.totalorder %s103, %s104
      %p113 = scmp.eq.s32.totalorder %s30, 0
      %p114 = por %p112, %p113
      %p115 = scmp.ne.s32.totalorder %s103, %s104
      %p116 = scmp.eq.s32.totalorder %s31, 1
      %p117 = por %p115, %p116
      %p119 = scmp.ne.s32.totalorder %s104, %s118
      %p120 = scmp.eq.s32.totalorder %s31, 0
      %p121 = por %p119, %p120
      %s123 = sadd.s32 %s122, 1
      %p126 = scmp.eq.s32.totalorder %s25, 1
      %p127 = scmp.ne.s32.totalorder %s122, %s124
      %p128 = scmp.eq.s32.totalorder %s25, 0
      %p129 = por %p127, %p128
      %p130 = scmp.ne.s32.totalorder %s122, %s124
      %p131 = scmp.eq.s32.totalorder %s30, 1
      %p132 = por %p130, %p131
      %p133 = scmp.ne.s32.totalorder %s124, %s125
      %p134 = scmp.eq.s32.totalorder %s30, 0
      %p135 = por %p133, %p134
      %p136 = scmp.ne.s32.totalorder %s124, %s125
      %p137 = scmp.eq.s32.totalorder %s31, 1
      %p138 = por %p136, %p137
      %p140 = scmp.ne.s32.totalorder %s125, %s139
      %p141 = scmp.eq.s32.totalorder %s31, 0
      %p142 = por %p140, %p141
      %s144 = sadd.s32 %s143, 1
      %p147 = scmp.eq.s32.totalorder %s25, 1
      %p148 = scmp.ne.s32.totalorder %s143, %s145
      %p149 = scmp.eq.s32.totalorder %s25, 0
      %p150 = por %p148, %p149
      %p151 = scmp.ne.s32.totalorder %s143, %s145
      %p152 = scmp.eq.s32.totalorder %s30, 1
      %p153 = por %p151, %p152
      %p154 = scmp.ne.s32.totalorder %s145, %s146
      %p155 = scmp.eq.s32.totalorder %s30, 0
      %p156 = por %p154, %p155
      %p157 = scmp.ne.s32.totalorder %s145, %s146
      %p158 = scmp.eq.s32.totalorder %s31, 1
      %p159 = por %p157, %p158
      %p161 = scmp.ne.s32.totalorder %s146, %s160
      %p162 = scmp.eq.s32.totalorder %s31, 0
      %p163 = por %p161, %p162
      %s165 = sadd.s32 %s164, 1
      %p168 = scmp.eq.s32.totalorder %s25, 1
      %p169 = scmp.ne.s32.totalorder %s164, %s166
      %p170 = scmp.eq.s32.totalorder %s25, 0
      %p171 = por %p169, %p170
      %p172 = scmp.ne.s32.totalorder %s164, %s166
      %p173 = scmp.eq.s32.totalorder %s30, 1
      %p174 = por %p172, %p173
      %p175 = scmp.ne.s32.totalorder %s166, %s167
      %p176 = scmp.eq.s32.totalorder %s30, 0
      %p177 = por %p175, %p176
      %p178 = scmp.ne.s32.totalorder %s166, %s167
      %p179 = scmp.eq.s32.totalorder %s31, 1
      %p180 = por %p178, %p179
      %p182 = scmp.ne.s32.totalorder %s167, %s181
      %p183 = scmp.eq.s32.totalorder %s31, 0
      %p184 = por %p182, %p183
      %s186 = sadd.s32 %s185, 1
      %p189 = scmp.eq.s32.totalorder %s25, 1
      %p190 = scmp.ne.s32.totalorder %s185, %s187
      %p191 = scmp.eq.s32.totalorder %s25, 0
      %p192 = por %p190, %p191
      %p193 = scmp.ne.s32.totalorder %s185, %s187
      %p194 = scmp.eq.s32.totalorder %s30, 1
      %p195 = por %p193, %p194
      %p196 = scmp.ne.s32.totalorder %s187, %s188
      %p197 = scmp.eq.s32.totalorder %s30, 0
      %p198 = por %p196, %p197
      %p199 = scmp.ne.s32.totalorder %s187, %s188
      %p200 = scmp.eq.s32.totalorder %s31, 1
      %p201 = por %p199, %p200
      %p203 = scmp.ne.s32.totalorder %s188, %s202
      %p204 = scmp.eq.s32.totalorder %s31, 0
      %p205 = por %p203, %p204
      %s207 = sadd.s32 %s206, 1
      %p210 = scmp.eq.s32.totalorder %s25, 1
      %p211 = scmp.ne.s32.totalorder %s206, %s208
      %p212 = scmp.eq.s32.totalorder %s25, 0
      %p213 = por %p211, %p212
      %p214 = scmp.ne.s32.totalorder %s206, %s208
      %p215 = scmp.eq.s32.totalorder %s30, 1
      %p216 = por %p214, %p215
      %p217 = scmp.ne.s32.totalorder %s208, %s209
      %p218 = scmp.eq.s32.totalorder %s30, 0
      %p219 = por %p217, %p218
      %p220 = scmp.ne.s32.totalorder %s208, %s209
      %p221 = scmp.eq.s32.totalorder %s31, 1
      %p222 = por %p220, %p221
      %p224 = scmp.ne.s32.totalorder %s209, %s223
      %p225 = scmp.eq.s32.totalorder %s31, 0
      %p226 = por %p224, %p225
      %s228 = sadd.s32 %s227, 1
      %p231 = scmp.eq.s32.totalorder %s25, 1
      %p232 = scmp.ne.s32.totalorder %s227, %s229
      %p233 = scmp.eq.s32.totalorder %s25, 0
      %p234 = por %p232, %p233
      %p235 = scmp.ne.s32.totalorder %s227, %s229
      %p236 = scmp.eq.s32.totalorder %s30, 1
      %p237 = por %p235, %p236
      %p238 = scmp.ne.s32.totalorder %s229, %s230
      %p239 = scmp.eq.s32.totalorder %s30, 0
      %p240 = por %p238, %p239
      %p241 = scmp.ne.s32.totalorder %s229, %s230
      %p242 = scmp.eq.s32.totalorder %s31, 1
      %p243 = por %p241, %p242
      %p245 = scmp.ne.s32.totalorder %s230, %s244
      %p246 = scmp.eq.s32.totalorder %s31, 0
      %p247 = por %p245, %p246
      %s249 = sadd.s32 %s248, 1
      %p252 = scmp.eq.s32.totalorder %s25, 1
      %p253 = scmp.ne.s32.totalorder %s248, %s250
      %p254 = scmp.eq.s32.totalorder %s25, 0
      %p255 = por %p253, %p254
      %p256 = scmp.ne.s32.totalorder %s248, %s250
      %p257 = scmp.eq.s32.totalorder %s30, 1
      %p258 = por %p256, %p257
      %p259 = scmp.ne.s32.totalorder %s250, %s251
      %p260 = scmp.eq.s32.totalorder %s30, 0
      %p261 = por %p259, %p260
      %p262 = scmp.ne.s32.totalorder %s250, %s251
      %p263 = scmp.eq.s32.totalorder %s31, 1
      %p264 = por %p262, %p263
      %p266 = scmp.ne.s32.totalorder %s251, %s265
      %p267 = scmp.eq.s32.totalorder %s31, 0
      %p268 = por %p266, %p267
      %s269 = ssub.s32 %s25, %s32
      %p270 = scmp.eq.s32.totalorder %s269, 0
      %s272 = sadd.s32 %s271, 1
      %s273 = scalar_select %p270, %s271, %s272
      %p276 = pneg %p270
      %p277 = scmp.eq.s32.totalorder %s25, 1
      %p278 = por %p276, %p277
      %p279 = scmp.ne.s32.totalorder %s271, %s274
      %p280 = scmp.eq.s32.totalorder %s25, 0
      %p281 = por %p279, %p280
      %p282 = scmp.ne.s32.totalorder %s271, %s274
      %p283 = scmp.eq.s32.totalorder %s30, 1
      %p284 = por %p282, %p283
      %p285 = scmp.ne.s32.totalorder %s274, %s275
      %p286 = scmp.eq.s32.totalorder %s30, 0
      %p287 = por %p285, %p286
      %p288 = scmp.ne.s32.totalorder %s274, %s275
      %p289 = scmp.eq.s32.totalorder %s31, 1
      %p290 = por %p288, %p289
      %p292 = scmp.ne.s32.totalorder %s275, %s291
      %p293 = scmp.eq.s32.totalorder %s31, 0
      %p294 = por %p292, %p293
      %p295 = scmp.le.s32.totalorder 1, %s25
      %p296 = scmp.lt.s32.totalorder %s25, 3
      %p297 = pnand %p295, %p296
      %p298 = pneg %p297
      // Predicated region
      $region9: #{tpu_custom_call.1} parent=5 // pred_check
        _
      $region10: #{tpu_custom_call.1} parent=5 // pred_check_branch
        %300 = sbr.rel (%p297) target = $region12
      $region11: #{tpu_custom_call.1} parent=5 // pred_region
        %s301 = ssub.s32 %s25, 1
        // Predicated region
        $region13: #{tpu_custom_call.1} parent=11 // pred_check
          %p302 = pneg %p72
        $region14: #{tpu_custom_call.1} parent=11 // pred_check_branch
          %304 = sbr.rel (%p302) target = $region16
        $region15: #{tpu_custom_call.1} parent=11 // pred_region
          %s306 = ssub.s32 1024, 1024
          %307 = vsyncadd [#allocation6], %s306
          %s308 = sshll.u32 [#allocation5], 4
          %s309 = int_to_ptr.vmem [resolvable:$true] %s308
          %314 = dma.hbm_to_vmem [thread:$0]  %s1, 1024, %s309, [#allocation6], 64, 64, 4
        $region16: #{tpu_custom_call.1} parent=11 // pred_fallthru
          _
        // Predicated region
        $region17: #{tpu_custom_call.1} parent=11 // pred_check
          %p315 = pneg %p93
        $region18: #{tpu_custom_call.1} parent=11 // pred_check_branch
          %317 = sbr.rel (%p315) target = $region20
        $region19: #{tpu_custom_call.1} parent=11 // pred_region
          _
        $region20: #{tpu_custom_call.1} parent=11 // pred_fallthru
          _
        // Predicated region
        $region21: #{tpu_custom_call.1} parent=11 // pred_check
          %p318 = pneg %p114
        $region22: #{tpu_custom_call.1} parent=11 // pred_check_branch
          %320 = sbr.rel (%p318) target = $region24
        $region23: #{tpu_custom_call.1} parent=11 // pred_region
          _
        $region24: #{tpu_custom_call.1} parent=11 // pred_fallthru
          _
        // Predicated region
        $region25: #{tpu_custom_call.1} parent=11 // pred_check
          %p321 = pneg %p135
        $region26: #{tpu_custom_call.1} parent=11 // pred_check_branch
          %323 = sbr.rel (%p321) target = $region28
        $region27: #{tpu_custom_call.1} parent=11 // pred_region
          _
        $region28: #{tpu_custom_call.1} parent=11 // pred_fallthru
          _
        // Predicated region
        $region29: #{tpu_custom_call.1} parent=11 // pred_check
          %p324 = pneg %p156
        $region30: #{tpu_custom_call.1} parent=11 // pred_check_branch
          %326 = sbr.rel (%p324) target = $region32
        $region31: #{tpu_custom_call.1} parent=11 // pred_region
          %s328 = ssub.s32 1024, 1024
          %329 = vsyncadd [#allocation6], %s328
          %s330 = sshll.u32 [#allocation7], 4
          %s331 = int_to_ptr.vmem [resolvable:$true] %s330
          %336 = dma.hbm_to_vmem [thread:$0]  %s5, 1024, %s331, [#allocation6], 64, 64, 4
        $region32: #{tpu_custom_call.1} parent=11 // pred_fallthru
          _
        // Predicated region
        $region33: #{tpu_custom_call.1} parent=11 // pred_check
          %p337 = pneg %p177
        $region34: #{tpu_custom_call.1} parent=11 // pred_check_branch
          %339 = sbr.rel (%p337) target = $region36
        $region35: #{tpu_custom_call.1} parent=11 // pred_region
          _
        $region36: #{tpu_custom_call.1} parent=11 // pred_fallthru
          _
        // Predicated region
        $region37: #{tpu_custom_call.1} parent=11 // pred_check
          %p340 = pneg %p198
        $region38: #{tpu_custom_call.1} parent=11 // pred_check_branch
          %342 = sbr.rel (%p340) target = $region40
        $region39: #{tpu_custom_call.1} parent=11 // pred_region
          _
        $region40: #{tpu_custom_call.1} parent=11 // pred_fallthru
          _
        // Predicated region
        $region41: #{tpu_custom_call.1} parent=11 // pred_check
          %p343 = pneg %p219
        $region42: #{tpu_custom_call.1} parent=11 // pred_check_branch
          %345 = sbr.rel (%p343) target = $region44
        $region43: #{tpu_custom_call.1} parent=11 // pred_region
          _
        $region44: #{tpu_custom_call.1} parent=11 // pred_fallthru
          _
        // Predicated region
        $region45: #{tpu_custom_call.1} parent=11 // pred_check
          %p346 = pneg %p240
        $region46: #{tpu_custom_call.1} parent=11 // pred_check_branch
          %348 = sbr.rel (%p346) target = $region48
        $region47: #{tpu_custom_call.1} parent=11 // pred_region
          %s350 = ssub.s32 1024, 1024
          %351 = vsyncadd [#allocation9], %s350
          %s352 = sshll.u32 [#allocation8], 4
          %s353 = int_to_ptr.vmem [resolvable:$true] %s352
          %358 = dma.hbm_to_vmem [thread:$0]  %s9, 1024, %s353, [#allocation9], 64, 64, 4
        $region48: #{tpu_custom_call.1} parent=11 // pred_fallthru
          _
        // Predicated region
        $region49: #{tpu_custom_call.1} parent=11 // pred_check
          %p359 = pneg %p261
        $region50: #{tpu_custom_call.1} parent=11 // pred_check_branch
          %361 = sbr.rel (%p359) target = $region52
        $region51: #{tpu_custom_call.1} parent=11 // pred_region
          _
        $region52: #{tpu_custom_call.1} parent=11 // pred_fallthru
          _
      $region12: #{tpu_custom_call.1} parent=5 // pred_fallthru
        _
      %p362 = scmp.lt.s32.totalorder %s25, 2
      // Predicated region
      $region53: #{tpu_custom_call.1} parent=5 // pred_check
        %p363 = pneg %p362
      $region54: #{tpu_custom_call.1} parent=5 // pred_check_branch
        %365 = sbr.rel (%p363) target = $region56
      $region55: #{tpu_custom_call.1} parent=5 // pred_region
        // Predicated region
        $region57: #{tpu_custom_call.1} parent=55 // pred_check
          %p366 = pneg %p45
        $region58: #{tpu_custom_call.1} parent=55 // pred_check_branch
          %368 = sbr.rel (%p366) target = $region60
        $region59: #{tpu_custom_call.1} parent=55 // pred_region
          %s369 = sand.u32 %s35, 1
          %s370 = scalar_lea.sflag [#allocation3], %s369
          %s371 = sand.u32 %s35, 1
          %s372 = smul.addr %s371, 16
          %s373 = scalar_lea.vmem [#allocation2], %s372
          %s374 = smul.u32 2, %s25
          %s376 = ssub.s32 256, 256
          %377 = vsyncadd %s370, %s376
          %s378 = smul.addr %s374, 128
          %s379 = scalar_lea.hbm %s0, %s378
          %s380 = sshll.u32 %s373, 4
          %s381 = int_to_ptr.vmem [resolvable:$true] %s380
          %386 = dma.hbm_to_vmem [thread:$0]  %s379, 256, %s381, %s370, 128, 128, 8
        $region60: #{tpu_custom_call.1} parent=55 // pred_fallthru
          _
      $region56: #{tpu_custom_call.1} parent=5 // pred_fallthru
        _
      %p387 = scmp.le.s32.totalorder 1, %s25
      %p388 = scmp.lt.s32.totalorder %s25, 3
      %p389 = pnand %p387, %p388
      %p390 = pneg %p389
      // Predicated region
      $region61: #{tpu_custom_call.1} parent=5 // pred_check
        _
      $region62: #{tpu_custom_call.1} parent=5 // pred_check_branch
        %392 = sbr.rel (%p389) target = $region64
      $region63: #{tpu_custom_call.1} parent=5 // pred_region
        %s393 = ssub.s32 %s25, 1
        %s394 = sand.u32 %s38, 1
        %s395 = scalar_lea.sflag [#allocation3], %s394
        %s396 = sand.u32 %s38, 1
        %s397 = smul.addr %s396, 16
        %s398 = scalar_lea.vmem [#allocation2], %s397
        // Predicated region
        $region65: #{tpu_custom_call.1} parent=63 // pred_check
          %p399 = pneg %p51
        $region66: #{tpu_custom_call.1} parent=63 // pred_check_branch
          %401 = sbr.rel (%p399) target = $region68
        $region67: #{tpu_custom_call.1} parent=63 // pred_region
          %402 = dma.done %s395, 256
        $region68: #{tpu_custom_call.1} parent=63 // pred_fallthru
          _
        // Predicated region
        $region69: #{tpu_custom_call.1} parent=63 // pred_check
          %p403 = pneg %p72
        $region70: #{tpu_custom_call.1} parent=63 // pred_check_branch
          %405 = sbr.rel (%p403) target = $region72
        $region71: #{tpu_custom_call.1} parent=63 // pred_region
          %406 = dma.done [#allocation6], 1024
        $region72: #{tpu_custom_call.1} parent=63 // pred_fallthru
          _
        // Predicated region
        $region73: #{tpu_custom_call.1} parent=63 // pred_check
          %p407 = pneg %p156
        $region74: #{tpu_custom_call.1} parent=63 // pred_check_branch
          %409 = sbr.rel (%p407) target = $region76
        $region75: #{tpu_custom_call.1} parent=63 // pred_region
          %410 = dma.done [#allocation6], 1024
        $region76: #{tpu_custom_call.1} parent=63 // pred_fallthru
          _
        // Predicated region
        $region77: #{tpu_custom_call.1} parent=63 // pred_check
          %p411 = pneg %p240
        $region78: #{tpu_custom_call.1} parent=63 // pred_check_branch
          %413 = sbr.rel (%p411) target = $region80
        $region79: #{tpu_custom_call.1} parent=63 // pred_region
          %414 = dma.done [#allocation9], 1024
        $region80: #{tpu_custom_call.1} parent=63 // pred_fallthru
          _
        %s415 = sand.u32 %s38, 1
        %s416 = scalar_lea.sflag [#allocation3], %s415
        %s417 = sand.u32 %s38, 1
        %s418 = smul.addr %s417, 16
        %s419 = scalar_lea.vmem [#allocation2], %s418
        %p420 = pneg %p51
        %p421 = pneg %p48
        %p422 = pneg %p72
        %p423 = pneg %p69
        %p424 = pneg %p93
        %p425 = pneg %p90
        %p426 = pneg %p114
        %p427 = pneg %p111
        %p428 = pneg %p135
        %p429 = pneg %p132
        %p430 = pneg %p156
        %p431 = pneg %p153
        %p432 = pneg %p177
        %p433 = pneg %p174
        %p434 = pneg %p198
        %p435 = pneg %p195
        %p436 = pneg %p219
        %p437 = pneg %p216
        %p438 = pneg %p240
        %p439 = pneg %p237
        %p440 = pneg %p261
        %p441 = pneg %p258
        %p442 = pneg %p287
        %p443 = pneg %p284
        %s444 = sand.u32 %s274, 1
        %s445 = scalar_lea.sflag [#allocation4], %s444
        %s446 = sand.u32 %s274, 1
        %s447 = smul.addr %s446, 16
        %s448 = scalar_lea.vmem [#allocation10], %s447
        %s449 = smul.u32 2, %s30
        %s450 = smul.u32 2, %s30
        %v452 = vld [vmem:[%s398] sm:$0xff]
        %v453 = vld [vmem:[%s398 + $0x8] sm:$0xff]
        %v454 = vpack.c.bf16 %v453, %v452
        %v455 = vld [vmem:[#allocation5] sm:$0xf]
        %v456 = vld [vmem:[#allocation5 + $0x4] sm:$0xf]
        %v457 = vld [vmem:[#allocation5 + $0x8] sm:$0xf]
        %v458 = vld [vmem:[#allocation5 + $0xc] sm:$0xf]
        %v459 = vld [vmem:[#allocation5 + $0x10] sm:$0xf]
        %v460 = vld [vmem:[#allocation5 + $0x14] sm:$0xf]
        %v461 = vld [vmem:[#allocation5 + $0x18] sm:$0xf]
        %v462 = vld [vmem:[#allocation5 + $0x1c] sm:$0xf]
        %v463 = vld [vmem:[#allocation5 + $0x20] sm:$0xf]
        %v464 = vld [vmem:[#allocation5 + $0x24] sm:$0xf]
        %v465 = vld [vmem:[#allocation5 + $0x28] sm:$0xf]
        %v466 = vld [vmem:[#allocation5 + $0x2c] sm:$0xf]
        %v467 = vld [vmem:[#allocation5 + $0x30] sm:$0xf]
        %v468 = vld [vmem:[#allocation5 + $0x34] sm:$0xf]
        %v469 = vld [vmem:[#allocation5 + $0x38] sm:$0xf]
        %v470 = vld [vmem:[#allocation5 + $0x3c] sm:$0xf]
        %v471 = vld [vmem:[%s2] sm:$0x1]
        %v473 = vlaneseq
        %v474 = vshrl.u32 %v473, 7
        %v475 = vsub.s32 0, %v474
        %v476 = vrot.slane %v471, %v475
        %v494 = vunpack.c.l.b16 %v455
        %v495 = vunpack.c.l.b16 %v456
        %v496 = vunpack.c.l.b16 %v457
        %v497 = vunpack.c.l.b16 %v458
        %v498 = vunpack.c.l.b16 %v459
        %v499 = vunpack.c.l.b16 %v460
        %v500 = vunpack.c.l.b16 %v461
        %v501 = vunpack.c.l.b16 %v462
        %v502 = vunpack.c.l.b16 %v463
        %v503 = vunpack.c.l.b16 %v464
        %v504 = vunpack.c.l.b16 %v465
        %v505 = vunpack.c.l.b16 %v466
        %v506 = vunpack.c.l.b16 %v467
        %v507 = vunpack.c.l.b16 %v468
        %v508 = vunpack.c.l.b16 %v469
        %v509 = vunpack.c.l.b16 %v470
        %v510 = vpack.c.b16 %v495, %v494
        %v511 = vpack.c.b16 %v497, %v496
        %v512 = vpack.c.b16 %v499, %v498
        %v513 = vpack.c.b16 %v501, %v500
        %v514 = vpack.c.b16 %v503, %v502
        %v515 = vpack.c.b16 %v505, %v504
        %v516 = vpack.c.b16 %v507, %v506
        %v517 = vpack.c.b16 %v509, %v508
        %526 = vmatprep.subr.bf16.mxu0 0
        %527 = vmatpush1.bf16.msra.mxu0 %v510
        %528 = vmatprep.subr.bf16.mxu0 0
        %529 = vmatpush1.bf16.msra.mxu0 %v511
        %530 = vmatprep.subr.bf16.mxu0 0
        %531 = vmatpush1.bf16.msra.mxu0 %v512
        %532 = vmatprep.subr.bf16.mxu0 0
        %533 = vmatpush1.bf16.msra.mxu0 %v513
        %534 = vmatprep.subr.bf16.mxu0 0
        %535 = vmatpush1.bf16.msra.mxu0 %v514
        %536 = vmatprep.subr.bf16.mxu0 0
        %537 = vmatpush1.bf16.msra.mxu0 %v515
        %538 = vmatprep.subr.bf16.mxu0 0
        %539 = vmatpush1.bf16.msra.mxu0 %v516
        %540 = vmatprep.subr.bf16.mxu0 0
        %541 = vmatpush1.bf16.msra.mxu0 %v517
        %542 = vmatprep.subr.bf16.mxu0 0
        %543 = vmatpush1.bf16.msra.mxu0 0
        %544 = vmatprep.subr.bf16.mxu0 0
        %545 = vmatpush1.bf16.msra.mxu0 0
        %546 = vmatprep.subr.bf16.mxu0 0
        %547 = vmatpush1.bf16.msra.mxu0 0
        %548 = vmatprep.subr.bf16.mxu0 0
        %549 = vmatpush1.bf16.msra.mxu0 0
        %550 = vmatprep.subr.bf16.mxu0 0
        %551 = vmatpush1.bf16.msra.mxu0 0
        %552 = vmatprep.subr.bf16.mxu0 0
        %553 = vmatpush1.bf16.msra.mxu0 0
        %554 = vmatprep.subr.bf16.mxu0 0
        %555 = vmatpush1.bf16.msra.mxu0 0
        %556 = vmatprep.subr.bf16.mxu0 0
        %557 = vmatpush1.bf16.msra.mxu0 0
        %558 = vmatprep.mubr.bf16.mxu0 0
        %559 = vmatmul.mubr.bf16.gmra.mrb[0].mxu0 %v454
        %v560 = vpop.f32.mrb[0].mxu0
        %v561 = vadd.f32 %v476, %v560
        %v562 = vpop.f32.mrb[0].mxu0
        %v563 = vpop.f32.mrb[0].mxu0
        %v564 = vadd.f32 %v476, %v563
        %v565 = vpop.f32.mrb[0].mxu0
        %566 = vdwg.mxu0
        %v567 = vld [vmem:[%s3] sm:$0x1]
        %v568 = vld [vmem:[%s4] sm:$0x1]
        %569 = vadd.xlane.f32.xlu0 %v561
        %v570 = vpop.xlane.xlu0 %569
        %571 = vadd.xlane.f32.xlu0 %v564
        %v572 = vpop.xlane.xlu0 %571
        %v573 = vmul.f32 %v561, %v561
        %v574 = vmul.f32 %v564, %v564
        %575 = vadd.xlane.f32.xlu0 %v573
        %v576 = vpop.xlane.xlu0 %575
        %577 = vadd.xlane.f32.xlu0 %v574
        %v578 = vpop.xlane.xlu0 %577
        %v579 = vmul.f32 %v570, 0.03125
        %v580 = vmul.f32 %v572, 0.03125
        %v581 = vmul.f32 %v576, 0.03125
        %v582 = vmul.f32 %v578, 0.03125
        %v583 = vmul.f32 %v579, %v579
        %v584 = vmul.f32 %v580, %v580
        %v585 = vsub.f32 %v581, %v583
        %v586 = vsub.f32 %v582, %v584
        %v587 = vadd.f32 %v585, 1e-05
        %v588 = vadd.f32 %v586, 1e-05
        %v589 = vrsqrt.pop %v587
        %v590 = vrsqrt.pop %v588
        %v591 = vsub.f32 %v561, %v579
        %v592 = vsub.f32 %v564, %v580
        %v593 = vmul.f32 %v591, %v589
        %v594 = vmul.f32 %v592, %v590
        %v596 = vlaneseq
        %v597 = vshrl.u32 %v596, 7
        %v598 = vsub.s32 0, %v597
        %v599 = vrot.slane %v567, %v598
        %v601 = vmul.f32 %v593, %v599
        %v602 = vmul.f32 %v594, %v599
        %v604 = vlaneseq
        %v605 = vshrl.u32 %v604, 7
        %v606 = vsub.s32 0, %v605
        %v607 = vrot.slane %v568, %v606
        %v609 = vadd.f32 %v601, %v607
        %v610 = vadd.f32 %v602, %v607
        %v611 = vmul.f32 %v609, 0.5
        %v612 = vmul.f32 %v610, 0.5
        %v613 = vmul.f32 %v609, 0.70710677
        %v614 = vmul.f32 %v610, 0.70710677
        %v615 = verf.f32.pop %v613
        %v616 = verf.f32.pop %v614
        %v617 = vadd.f32 %v615, 1.0
        %v618 = vadd.f32 %v616, 1.0
        %v619 = vmul.f32 %v611, %v617
        %v620 = vmul.f32 %v612, %v618
        %v621 = vpack.c.bf16 %v620, %v619
        %v622 = vld [vmem:[#allocation7] sm:$0xf]
        %v623 = vld [vmem:[#allocation7 + $0x4] sm:$0xf]
        %v624 = vld [vmem:[#allocation7 + $0x8] sm:$0xf]
        %v625 = vld [vmem:[#allocation7 + $0xc] sm:$0xf]
        %v626 = vld [vmem:[#allocation7 + $0x10] sm:$0xf]
        %v627 = vld [vmem:[#allocation7 + $0x14] sm:$0xf]
        %v628 = vld [vmem:[#allocation7 + $0x18] sm:$0xf]
        %v629 = vld [vmem:[#allocation7 + $0x1c] sm:$0xf]
        %v630 = vld [vmem:[#allocation7 + $0x20] sm:$0xf]
        %v631 = vld [vmem:[#allocation7 + $0x24] sm:$0xf]
        %v632 = vld [vmem:[#allocation7 + $0x28] sm:$0xf]
        %v633 = vld [vmem:[#allocation7 + $0x2c] sm:$0xf]
        %v634 = vld [vmem:[#allocation7 + $0x30] sm:$0xf]
        %v635 = vld [vmem:[#allocation7 + $0x34] sm:$0xf]
        %v636 = vld [vmem:[#allocation7 + $0x38] sm:$0xf]
        %v637 = vld [vmem:[#allocation7 + $0x3c] sm:$0xf]
        %v638 = vld [vmem:[%s6] sm:$0x1]
        %v640 = vlaneseq
        %v641 = vshrl.u32 %v640, 7
        %v642 = vsub.s32 0, %v641
        %v643 = vrot.slane %v638, %v642
        %v661 = vunpack.c.l.b16 %v622
        %v662 = vunpack.c.l.b16 %v623
        %v663 = vunpack.c.l.b16 %v624
        %v664 = vunpack.c.l.b16 %v625
        %v665 = vunpack.c.l.b16 %v626
        %v666 = vunpack.c.l.b16 %v627
        %v667 = vunpack.c.l.b16 %v628
        %v668 = vunpack.c.l.b16 %v629
        %v669 = vunpack.c.l.b16 %v630
        %v670 = vunpack.c.l.b16 %v631
        %v671 = vunpack.c.l.b16 %v632
        %v672 = vunpack.c.l.b16 %v633
        %v673 = vunpack.c.l.b16 %v634
        %v674 = vunpack.c.l.b16 %v635
        %v675 = vunpack.c.l.b16 %v636
        %v676 = vunpack.c.l.b16 %v637
        %v677 = vpack.c.b16 %v662, %v661
        %v678 = vpack.c.b16 %v664, %v663
        %v679 = vpack.c.b16 %v666, %v665
        %v680 = vpack.c.b16 %v668, %v667
        %v681 = vpack.c.b16 %v670, %v669
        %v682 = vpack.c.b16 %v672, %v671
        %v683 = vpack.c.b16 %v674, %v673
        %v684 = vpack.c.b16 %v676, %v675
        %693 = vmatprep.subr.bf16.mxu0 0
        %694 = vmatpush1.bf16.msra.mxu0 %v677
        %695 = vmatprep.subr.bf16.mxu0 0
        %696 = vmatpush1.bf16.msra.mxu0 %v678
        %697 = vmatprep.subr.bf16.mxu0 0
        %698 = vmatpush1.bf16.msra.mxu0 %v679
        %699 = vmatprep.subr.bf16.mxu0 0
        %700 = vmatpush1.bf16.msra.mxu0 %v680
        %701 = vmatprep.subr.bf16.mxu0 0
        %702 = vmatpush1.bf16.msra.mxu0 %v681
        %703 = vmatprep.subr.bf16.mxu0 0
        %704 = vmatpush1.bf16.msra.mxu0 %v682
        %705 = vmatprep.subr.bf16.mxu0 0
        %706 = vmatpush1.bf16.msra.mxu0 %v683
        %707 = vmatprep.subr.bf16.mxu0 0
        %708 = vmatpush1.bf16.msra.mxu0 %v684
        %709 = vmatprep.subr.bf16.mxu0 0
        %710 = vmatpush1.bf16.msra.mxu0 0
        %711 = vmatprep.subr.bf16.mxu0 0
        %712 = vmatpush1.bf16.msra.mxu0 0
        %713 = vmatprep.subr.bf16.mxu0 0
        %714 = vmatpush1.bf16.msra.mxu0 0
        %715 = vmatprep.subr.bf16.mxu0 0
        %716 = vmatpush1.bf16.msra.mxu0 0
        %717 = vmatprep.subr.bf16.mxu0 0
        %718 = vmatpush1.bf16.msra.mxu0 0
        %719 = vmatprep.subr.bf16.mxu0 0
        %720 = vmatpush1.bf16.msra.mxu0 0
        %721 = vmatprep.subr.bf16.mxu0 0
        %722 = vmatpush1.bf16.msra.mxu0 0
        %723 = vmatprep.subr.bf16.mxu0 0
        %724 = vmatpush1.bf16.msra.mxu0 0
        %725 = vmatprep.mubr.bf16.mxu0 0
        %726 = vmatmul.mubr.bf16.gmra.mrb[0].mxu0 %v621
        %v727 = vpop.f32.mrb[0].mxu0
        %v728 = vadd.f32 %v643, %v727
        %v729 = vpop.f32.mrb[0].mxu0
        %v730 = vpop.f32.mrb[0].mxu0
        %v731 = vadd.f32 %v643, %v730
        %v732 = vpop.f32.mrb[0].mxu0
        %733 = vdwg.mxu0
        %v734 = vld [vmem:[%s7] sm:$0x1]
        %v735 = vld [vmem:[%s8] sm:$0x1]
        %736 = vadd.xlane.f32.xlu0 %v728
        %v737 = vpop.xlane.xlu0 %736
        %738 = vadd.xlane.f32.xlu0 %v731
        %v739 = vpop.xlane.xlu0 %738
        %v740 = vmul.f32 %v728, %v728
        %v741 = vmul.f32 %v731, %v731
        %742 = vadd.xlane.f32.xlu0 %v740
        %v743 = vpop.xlane.xlu0 %742
        %744 = vadd.xlane.f32.xlu0 %v741
        %v745 = vpop.xlane.xlu0 %744
        %v746 = vmul.f32 %v737, 0.0625
        %v747 = vmul.f32 %v739, 0.0625
        %v748 = vmul.f32 %v743, 0.0625
        %v749 = vmul.f32 %v745, 0.0625
        %v750 = vmul.f32 %v746, %v746
        %v751 = vmul.f32 %v747, %v747
        %v752 = vsub.f32 %v748, %v750
        %v753 = vsub.f32 %v749, %v751
        %v754 = vadd.f32 %v752, 1e-05
        %v755 = vadd.f32 %v753, 1e-05
        %v756 = vrsqrt.pop %v754
        %v757 = vrsqrt.pop %v755
        %v758 = vsub.f32 %v728, %v746
        %v759 = vsub.f32 %v731, %v747
        %v760 = vmul.f32 %v758, %v756
        %v761 = vmul.f32 %v759, %v757
        %v763 = vlaneseq
        %v764 = vshrl.u32 %v763, 7
        %v765 = vsub.s32 0, %v764
        %v766 = vrot.slane %v734, %v765
        %v768 = vmul.f32 %v760, %v766
        %v769 = vmul.f32 %v761, %v766
        %v771 = vlaneseq
        %v772 = vshrl.u32 %v771, 7
        %v773 = vsub.s32 0, %v772
        %v774 = vrot.slane %v735, %v773
        %v776 = vadd.f32 %v768, %v774
        %v777 = vadd.f32 %v769, %v774
        %v778 = vmul.f32 %v776, 0.5
        %v779 = vmul.f32 %v777, 0.5
        %v780 = vmul.f32 %v776, 0.70710677
        %v781 = vmul.f32 %v777, 0.70710677
        %v782 = verf.f32.pop %v780
        %v783 = verf.f32.pop %v781
        %v784 = vadd.f32 %v782, 1.0
        %v785 = vadd.f32 %v783, 1.0
        %v786 = vmul.f32 %v778, %v784
        %v787 = vmul.f32 %v779, %v785
        %v788 = vpack.c.bf16 %v787, %v786
        %v789 = vld [vmem:[#allocation8] sm:$0xf]
        %v790 = vld [vmem:[#allocation8 + $0x4] sm:$0xf]
        %v791 = vld [vmem:[#allocation8 + $0x8] sm:$0xf]
        %v792 = vld [vmem:[#allocation8 + $0xc] sm:$0xf]
        %v793 = vld [vmem:[#allocation8 + $0x10] sm:$0xf]
        %v794 = vld [vmem:[#allocation8 + $0x14] sm:$0xf]
        %v795 = vld [vmem:[#allocation8 + $0x18] sm:$0xf]
        %v796 = vld [vmem:[#allocation8 + $0x1c] sm:$0xf]
        %v797 = vld [vmem:[#allocation8 + $0x20] sm:$0xf]
        %v798 = vld [vmem:[#allocation8 + $0x24] sm:$0xf]
        %v799 = vld [vmem:[#allocation8 + $0x28] sm:$0xf]
        %v800 = vld [vmem:[#allocation8 + $0x2c] sm:$0xf]
        %v801 = vld [vmem:[#allocation8 + $0x30] sm:$0xf]
        %v802 = vld [vmem:[#allocation8 + $0x34] sm:$0xf]
        %v803 = vld [vmem:[#allocation8 + $0x38] sm:$0xf]
        %v804 = vld [vmem:[#allocation8 + $0x3c] sm:$0xf]
        %v805 = vld [vmem:[%s10] sm:$0x1]
        %v807 = vlaneseq
        %v808 = vshrl.u32 %v807, 7
        %v809 = vsub.s32 0, %v808
        %v810 = vrot.slane %v805, %v809
        %v828 = vunpack.c.l.b16 %v789
        %v829 = vunpack.c.l.b16 %v790
        %v830 = vunpack.c.l.b16 %v791
        %v831 = vunpack.c.l.b16 %v792
        %v832 = vunpack.c.l.b16 %v793
        %v833 = vunpack.c.l.b16 %v794
        %v834 = vunpack.c.l.b16 %v795
        %v835 = vunpack.c.l.b16 %v796
        %v836 = vunpack.c.l.b16 %v797
        %v837 = vunpack.c.l.b16 %v798
        %v838 = vunpack.c.l.b16 %v799
        %v839 = vunpack.c.l.b16 %v800
        %v840 = vunpack.c.l.b16 %v801
        %v841 = vunpack.c.l.b16 %v802
        %v842 = vunpack.c.l.b16 %v803
        %v843 = vunpack.c.l.b16 %v804
        %v844 = vpack.c.b16 %v829, %v828
        %v845 = vpack.c.b16 %v831, %v830
        %v846 = vpack.c.b16 %v833, %v832
        %v847 = vpack.c.b16 %v835, %v834
        %v848 = vpack.c.b16 %v837, %v836
        %v849 = vpack.c.b16 %v839, %v838
        %v850 = vpack.c.b16 %v841, %v840
        %v851 = vpack.c.b16 %v843, %v842
        %860 = vmatprep.subr.bf16.mxu0 0
        %861 = vmatpush1.bf16.msra.mxu0 %v844
        %862 = vmatprep.subr.bf16.mxu0 0
        %863 = vmatpush1.bf16.msra.mxu0 %v845
        %864 = vmatprep.subr.bf16.mxu0 0
        %865 = vmatpush1.bf16.msra.mxu0 %v846
        %866 = vmatprep.subr.bf16.mxu0 0
        %867 = vmatpush1.bf16.msra.mxu0 %v847
        %868 = vmatprep.subr.bf16.mxu0 0
        %869 = vmatpush1.bf16.msra.mxu0 %v848
        %870 = vmatprep.subr.bf16.mxu0 0
        %871 = vmatpush1.bf16.msra.mxu0 %v849
        %872 = vmatprep.subr.bf16.mxu0 0
        %873 = vmatpush1.bf16.msra.mxu0 %v850
        %874 = vmatprep.subr.bf16.mxu0 0
        %875 = vmatpush1.bf16.msra.mxu0 %v851
        %876 = vmatprep.subr.bf16.mxu0 0
        %877 = vmatpush1.bf16.msra.mxu0 0
        %878 = vmatprep.subr.bf16.mxu0 0
        %879 = vmatpush1.bf16.msra.mxu0 0
        %880 = vmatprep.subr.bf16.mxu0 0
        %881 = vmatpush1.bf16.msra.mxu0 0
        %882 = vmatprep.subr.bf16.mxu0 0
        %883 = vmatpush1.bf16.msra.mxu0 0
        %884 = vmatprep.subr.bf16.mxu0 0
        %885 = vmatpush1.bf16.msra.mxu0 0
        %886 = vmatprep.subr.bf16.mxu0 0
        %887 = vmatpush1.bf16.msra.mxu0 0
        %888 = vmatprep.subr.bf16.mxu0 0
        %889 = vmatpush1.bf16.msra.mxu0 0
        %890 = vmatprep.subr.bf16.mxu0 0
        %891 = vmatpush1.bf16.msra.mxu0 0
        %892 = vmatprep.mubr.bf16.mxu0 0
        %893 = vmatmul.mubr.bf16.gmra.mrb[0].mxu0 %v788
        %v894 = vpop.f32.mrb[0].mxu0
        %v895 = vadd.f32 %v810, %v894
        %v896 = vpop.f32.mrb[0].mxu0
        %v897 = vpop.f32.mrb[0].mxu0
        %v898 = vadd.f32 %v810, %v897
        %v899 = vpop.f32.mrb[0].mxu0
        %900 = vdwg.mxu0
        %901 = vst [vmem:[%s448] sm:$0xff] %v895
        %902 = vst [vmem:[%s448 + $0x8] sm:$0xff] %v898
        %s903 = sand.u32 %s274, 1
        %s904 = scalar_lea.sflag [#allocation4], %s903
        %s905 = sand.u32 %s274, 1
        %s906 = smul.addr %s905, 16
        %s907 = scalar_lea.vmem [#allocation10], %s906
        // Predicated region
        $region81: #{tpu_custom_call.1} parent=63 // pred_check
          %p908 = pneg %p284
        $region82: #{tpu_custom_call.1} parent=63 // pred_check_branch
          %910 = sbr.rel (%p908) target = $region84
        $region83: #{tpu_custom_call.1} parent=63 // pred_region
          %s911 = smul.u32 2, %s30
          %s913 = ssub.s32 256, 256
          %914 = vsyncadd %s904, %s913
          %s915 = smul.addr %s911, 128
          %s916 = scalar_lea.hbm %s11, %s915
          %s917 = sshll.u32 %s907, 4
          %s918 = int_to_ptr.vmem [resolvable:$true] %s917
          %923 = dma.vmem_to_hbm [thread:$0]  %s918, 256, %s916, %s904, 128, 128, 8
        $region84: #{tpu_custom_call.1} parent=63 // pred_fallthru
          _
      $region64: #{tpu_custom_call.1} parent=5 // pred_fallthru
        _
      %p924 = scmp.le.s32.totalorder 2, %s25
      // Predicated region
      $region85: #{tpu_custom_call.1} parent=5 // pred_check
        %p925 = pneg %p924
      $region86: #{tpu_custom_call.1} parent=5 // pred_check_branch
        %927 = sbr.rel (%p925) target = $region88
      $region87: #{tpu_custom_call.1} parent=5 // pred_region
        %s928 = ssub.s32 %s25, 2
        // Predicated region
        $region89: #{tpu_custom_call.1} parent=87 // pred_check
          %p929 = pneg %p290
        $region90: #{tpu_custom_call.1} parent=87 // pred_check_branch
          %931 = sbr.rel (%p929) target = $region92
        $region91: #{tpu_custom_call.1} parent=87 // pred_region
          %s932 = sand.u32 %s275, 1
          %s933 = scalar_lea.sflag [#allocation4], %s932
          %s934 = sand.u32 %s275, 1
          %s935 = smul.addr %s934, 16
          %s936 = scalar_lea.vmem [#allocation10], %s935
          %937 = dma.done %s933, 256
        $region92: #{tpu_custom_call.1} parent=87 // pred_fallthru
          _
      $region88: #{tpu_custom_call.1} parent=5 // pred_fallthru
        _
    $region6: #{tpu_custom_call.1} parent=1 // loop_footer
      %s29 = sadd.s32 1, %s25
    $region7: #{tpu_custom_call.1} parent=1 // loop_footer_branch
      %24 = sbr.rel target = $region3
    $region8: #{tpu_custom_call.1} parent=1 // loop_exit
      _
    %938 = vsyncpa [#allocation3], 1
    %s939 = scalar_lea.sflag [#allocation3], 1
    %940 = vsyncpa %s939, 1
    %941 = vsyncpa [#allocation6], 1
    %942 = vsyncpa [#allocation9], 1
    %943 = vsyncpa [#allocation4], 1
    %s944 = scalar_lea.sflag [#allocation4], 1
    %945 = vsyncpa %s944, 1

</llo_original>
